<compile_context>
chip_gen: v7x
topology: tpu7x:2x2x1
jax: 0.10.0
libtpu: 0.0.40
codegen_flags: <defaults>
</compile_context>

<pallas_src>
import functools
import math

import jax
import jax.numpy as jnp
from jax import lax
from jax.experimental import pallas as pl
from jax.experimental.pallas import tpu as pltpu


def make_pos_encoding(max_len, d_model):
    """Same construction as PositionEmbedding.__init__ (plain JAX setup glue)."""
    pos = jnp.arange(max_len, dtype=jnp.float32)[:, None]
    _2i = jnp.arange(0, d_model, 2, dtype=jnp.float32)
    angle = pos / (10000.0 ** (_2i / d_model))
    pe = jnp.zeros((max_len, d_model), jnp.float32)
    pe = pe.at[:, 0::2].set(jnp.sin(angle))
    pe = pe.at[:, 1::2].set(jnp.cos(angle))
    return pe


def _vmem_table_kernel(ids_ref, emb_ref, pos_ref, out_ref, gather_ref, *,
                       seq_len, tile, scale):
    """Whole table resident in VMEM: per-row dynamic-slice gather, dense store."""
    s_idx = pl.program_id(0)
    b_idx = pl.program_id(1)
    base = b_idx * seq_len + s_idx * tile

    def gather_row(j, carry):
        tok = ids_ref[base + j]                                  # scalar id (SMEM)
        gather_ref[pl.ds(j, 1), :] = emb_ref[pl.ds(tok, 1), :]   # VMEM -> VMEM row
        return carry

    lax.fori_loop(0, tile, gather_row, 0, unroll=min(8, tile))

    vals = gather_ref[...].astype(jnp.float32)
    out_ref[0, :, :] = (vals * scale + pos_ref[...]).astype(out_ref.dtype)


def _hbm_gather_kernel(ids_ref, emb_hbm, pos_ref, out_ref, gather_ref, sem_ref, *,
                       seq_len, tile, scale):
    """HBM row-gather with cross-grid-step double-buffered prefetch over b."""
    s_idx = pl.program_id(0)
    b_idx = pl.program_id(1)
    n_b = pl.num_programs(1)
    cur = b_idx % 2
    nxt = (b_idx + 1) % 2

    def issue_tile(batch_idx, slot):
        base = batch_idx * seq_len + s_idx * tile

        def issue_row(j, carry):
            tok = ids_ref[base + j]            # id read from SMEM, no waits in loop
            pltpu.make_async_copy(
                emb_hbm.at[pl.ds(tok, 1), :],                 # (1, D) row in HBM
                gather_ref.at[slot, pl.ds(j, 1), :],          # (1, D) slot in VMEM
                sem_ref.at[slot],
            ).start()
            return carry

        lax.fori_loop(0, tile, issue_row, 0, unroll=min(8, tile))

    def wait_tile(slot):
        # Shape-identical, dst-only wait descriptor: its byte count equals the
        # sum of the `tile` (1, D) row copies issued against this semaphore.
        pltpu.make_async_copy(gather_ref.at[slot], gather_ref.at[slot],
                              sem_ref.at[slot]).wait()

    # Cold start (b == 0): this tile was not prefetched by a previous step.
    @pl.when(b_idx == 0)
    def _():
        issue_tile(b_idx, cur)

    wait_tile(cur)

    # Prefetch next batch row's tile; overlaps with this step's VPU pass,
    # the (Ts, D) output writeback and the auto-pipelined pos/out DMAs.
    @pl.when(b_idx + 1 < n_b)
    def _():
        issue_tile(b_idx + 1, nxt)

    vals = gather_ref[cur].astype(jnp.float32)
    out_ref[0, :, :] = (vals * scale + pos_ref[...]).astype(out_ref.dtype)


def _pick_seq_tile(seq_len):
    """Largest tile (<=512, multiple of 8) dividing S; full-S fallback is a
    legal block shape (block == full array dim satisfies the (8,128) rule)."""
    for ts in (512, 256, 128, 64, 32, 16, 8):
        if seq_len % ts == 0:
            return ts
    return seq_len


def _vmem_capacity_bytes():
    try:
        cap = getattr(pltpu.get_tpu_info(), "vmem_capacity_bytes", None)
        if cap:
            return int(cap)
    except Exception:
        pass
    return 64 << 20   # conservative fallback = v7x per-TensorCore VMEM


def transformer_embedding(ids, emb_table, pos_table, *, out_dtype=None,
                          force_hbm_gather=False):
    """ids: int32 [B, S]; emb_table: [V, D]; pos_table: [max_len, D]."""
    B, S = ids.shape
    V, D = emb_table.shape
    scale = math.sqrt(D)
    out_dtype = emb_table.dtype if out_dtype is None else jnp.dtype(out_dtype)

    Ts = _pick_seq_tile(S)
    n_s_tiles = S // Ts

    pos_slice = pos_table[:S]                         # PositionEmbedding.forward
    # Clamp ids so gathers (HBM DMA or VMEM slice) can never go out of bounds.
    ids_flat = jnp.clip(ids, 0, V - 1).astype(jnp.int32).reshape(-1)

    emb_itemsize = jnp.dtype(emb_table.dtype).itemsize
    out_itemsize = jnp.dtype(out_dtype).itemsize
    capacity = _vmem_capacity_bytes()

    # Auto-pipelined (double-buffered) pos + out tiles.
    tile_bytes = Ts * D * (2 * 4 + 2 * out_itemsize)
    table_bytes = V * D * emb_itemsize
    # Table BlockSpec is double-buffered by the pipeliner -> budget 2x.
    vmem_table_need = 2 * table_bytes + tile_bytes + Ts * D * emb_itemsize + (4 << 20)
    use_vmem_table = (not force_hbm_gather) and vmem_table_need <= int(0.6 * capacity)

    common = dict(seq_len=S, tile=Ts, scale=scale)

    if use_vmem_table:
        kernel = functools.partial(_vmem_table_kernel, **common)
        in_specs = [
            pl.BlockSpec((V, D), lambda s, b, ids: (0, 0)),   # table resident in VMEM
            pl.BlockSpec((Ts, D), lambda s, b, ids: (s, 0)),  # pos tile (batch-invariant)
        ]
        scratch_shapes = [pltpu.VMEM((Ts, D), emb_table.dtype)]
        dim_sem = ("parallel", "parallel")
        vmem_needed = vmem_table_need
    else:
        kernel = functools.partial(_hbm_gather_kernel, **common)
        in_specs = [
            pl.BlockSpec(memory_space=pl.ANY),                # table stays in HBM
            pl.BlockSpec((Ts, D), lambda s, b, ids: (s, 0)),
        ]
        scratch_shapes = [
            pltpu.VMEM((2, Ts, D), emb_table.dtype),          # double-buffered gather
            pltpu.SemaphoreType.DMA((2,)),
        ]
        # b axis must stay sequential for the cross-step prefetch chain.
        dim_sem = ("parallel", "arbitrary")
        vmem_needed = tile_bytes + 2 * Ts * D * emb_itemsize + (4 << 20)

    vmem_limit = int(min(max(vmem_needed, 8 << 20), capacity))

    return pl.pallas_call(
        kernel,
        out_shape=jax.ShapeDtypeStruct((B, S, D), out_dtype),
        grid_spec=pltpu.PrefetchScalarGridSpec(
            num_scalar_prefetch=1,                            # flat token ids -> SMEM
            grid=(n_s_tiles, B),                              # b innermost: pos tile resident
            in_specs=in_specs,
            out_specs=pl.BlockSpec((1, Ts, D), lambda s, b, ids: (b, s, 0)),
            scratch_shapes=scratch_shapes,
        ),
        compiler_params=pltpu.CompilerParams(
            dimension_semantics=dim_sem,
            vmem_limit_bytes=vmem_limit,
        ),
    )(ids_flat, emb_table, pos_slice)


if __name__ == "__main__":
    # Small, forward-consistent shapes.
    B, S = 2, 8
    vocab_size, d_model, max_len = 64, 128, 16

    key = jax.random.PRNGKey(0)
    k_ids, k_emb = jax.random.split(key)

    ids = jax.random.randint(k_ids, (B, S), 0, vocab_size, dtype=jnp.int32)
    # nn.Embedding default init: N(0, 1)
    emb_table = jax.random.normal(k_emb, (vocab_size, d_model), dtype=jnp.float32)
    pos_table = make_pos_encoding(max_len, d_model)

    ref = jnp.take(emb_table, ids, axis=0) * math.sqrt(d_model) + pos_table[:S][None]

    # Default path: table fits VMEM at these shapes -> VMEM-resident gather.
    out = jax.block_until_ready(transformer_embedding(ids, emb_table, pos_table))
    assert out.shape == (B, S, d_model)
    assert jnp.allclose(out, ref, atol=1e-5, rtol=1e-5)

    # HBM row-gather path (what large-vocab / v7x configurations take).
    out_hbm = jax.block_until_ready(
        transformer_embedding(ids, emb_table, pos_table, force_hbm_gather=True))
    assert jnp.allclose(out_hbm, ref, atol=1e-5, rtol=1e-5)

    # Multi-tile sequence: exercises s > 0 and the prefetch-chain reset at b == 0.
    S2 = 1024
    ids2 = jax.random.randint(jax.random.PRNGKey(1), (B, S2), 0, vocab_size,
                              dtype=jnp.int32)
    pos_table2 = make_pos_encoding(S2, d_model)
    ref2 = jnp.take(emb_table, ids2, axis=0) * math.sqrt(d_model) + pos_table2[:S2][None]
    out2 = jax.block_until_ready(
        transformer_embedding(ids2, emb_table, pos_table2, force_hbm_gather=True))
    assert jnp.allclose(out2, ref2, atol=1e-5, rtol=1e-5)

    print("KERNEL_OK")
</pallas_src>

<mosaic_0001>
module attributes {stable_mosaic.version = 11 : i64} {
  func.func @_vmem_table_kernel(%arg0: i32, %arg1: i32, %arg2: memref<16xi32, #tpu.memory_space<smem>>, %arg3: memref<64x128xf32, #tpu.memory_space<vmem>>, %arg4: memref<8x128xf32, #tpu.memory_space<vmem>>, %arg5: memref<1x8x128xf32, #tpu.memory_space<vmem>>, %arg6: memref<8x128xf32, #tpu.memory_space<vmem>>) attributes {dimension_semantics = [#tpu.dimension_semantics<parallel>, #tpu.dimension_semantics<parallel>], iteration_bounds = array<i64: 1, 2>, scalar_prefetch = 1 : i64, scratch_operands = 1 : i64, tpu.core_type = #tpu.core_type<tc>, window_params = [{pipeline_mode = #tpu.pipeline_mode<synchronous>, transform_indices = @transform_0, window_bounds = array<i64: 64, 128>}, {transform_indices = @transform_1, window_bounds = array<i64: 8, 128>}, {transform_indices = @transform_2, window_bounds = array<i64: 1, 8, 128>}]} {
    %c8_i32 = arith.constant 8 : i32
    %0 = arith.muli %arg1, %c8_i32 : i32
    %c8_i32_0 = arith.constant 8 : i32
    %1 = arith.muli %arg0, %c8_i32_0 : i32
    %2 = arith.addi %0, %1 : i32
    %c0_i32 = arith.constant 0 : i32
    %3 = arith.addi %2, %c0_i32 : i32
    %4 = arith.index_cast %3 : i32 to index
    %5 = memref.load %arg2[%4] : memref<16xi32, #tpu.memory_space<smem>>
    %6 = arith.index_cast %5 : i32 to index
    %c0 = arith.constant 0 : index
    %7 = vector.load %arg3[%6, %c0] : memref<64x128xf32, #tpu.memory_space<vmem>>, vector<1x128xf32>
    %8 = arith.index_cast %c0_i32 : i32 to index
    %c0_1 = arith.constant 0 : index
    %9 = vector.load %arg6[%8, %c0_1] : memref<8x128xf32, #tpu.memory_space<vmem>>, vector<1x128xf32>
    tpu.vector_store %arg6[%8, %c0_1], %7 {strides = array<i32>} : memref<8x128xf32, #tpu.memory_space<vmem>>, vector<1x128xf32>,
    %c1_i32 = arith.constant 1 : i32
    %10 = arith.addi %2, %c1_i32 : i32
    %11 = arith.index_cast %10 : i32 to index
    %12 = memref.load %arg2[%11] : memref<16xi32, #tpu.memory_space<smem>>
    %13 = arith.index_cast %12 : i32 to index
    %c0_2 = arith.constant 0 : index
    %14 = vector.load %arg3[%13, %c0_2] : memref<64x128xf32, #tpu.memory_space<vmem>>, vector<1x128xf32>
    %15 = arith.index_cast %c1_i32 : i32 to index
    %c0_3 = arith.constant 0 : index
    %16 = vector.load %arg6[%15, %c0_3] : memref<8x128xf32, #tpu.memory_space<vmem>>, vector<1x128xf32>
    tpu.vector_store %arg6[%15, %c0_3], %14 {strides = array<i32>} : memref<8x128xf32, #tpu.memory_space<vmem>>, vector<1x128xf32>,
    %c2_i32 = arith.constant 2 : i32
    %17 = arith.addi %2, %c2_i32 : i32
    %18 = arith.index_cast %17 : i32 to index
    %19 = memref.load %arg2[%18] : memref<16xi32, #tpu.memory_space<smem>>
    %20 = arith.index_cast %19 : i32 to index
    %c0_4 = arith.constant 0 : index
    %21 = vector.load %arg3[%20, %c0_4] : memref<64x128xf32, #tpu.memory_space<vmem>>, vector<1x128xf32>
    %22 = arith.index_cast %c2_i32 : i32 to index
    %c0_5 = arith.constant 0 : index
    %23 = vector.load %arg6[%22, %c0_5] : memref<8x128xf32, #tpu.memory_space<vmem>>, vector<1x128xf32>
    tpu.vector_store %arg6[%22, %c0_5], %21 {strides = array<i32>} : memref<8x128xf32, #tpu.memory_space<vmem>>, vector<1x128xf32>,
    %c3_i32 = arith.constant 3 : i32
    %24 = arith.addi %2, %c3_i32 : i32
    %25 = arith.index_cast %24 : i32 to index
    %26 = memref.load %arg2[%25] : memref<16xi32, #tpu.memory_space<smem>>
    %27 = arith.index_cast %26 : i32 to index
    %c0_6 = arith.constant 0 : index
    %28 = vector.load %arg3[%27, %c0_6] : memref<64x128xf32, #tpu.memory_space<vmem>>, vector<1x128xf32>
    %29 = arith.index_cast %c3_i32 : i32 to index
    %c0_7 = arith.constant 0 : index
    %30 = vector.load %arg6[%29, %c0_7] : memref<8x128xf32, #tpu.memory_space<vmem>>, vector<1x128xf32>
    tpu.vector_store %arg6[%29, %c0_7], %28 {strides = array<i32>} : memref<8x128xf32, #tpu.memory_space<vmem>>, vector<1x128xf32>,
    %c4_i32 = arith.constant 4 : i32
    %31 = arith.addi %2, %c4_i32 : i32
    %32 = arith.index_cast %31 : i32 to index
    %33 = memref.load %arg2[%32] : memref<16xi32, #tpu.memory_space<smem>>
    %34 = arith.index_cast %33 : i32 to index
    %c0_8 = arith.constant 0 : index
    %35 = vector.load %arg3[%34, %c0_8] : memref<64x128xf32, #tpu.memory_space<vmem>>, vector<1x128xf32>
    %36 = arith.index_cast %c4_i32 : i32 to index
    %c0_9 = arith.constant 0 : index
    %37 = vector.load %arg6[%36, %c0_9] : memref<8x128xf32, #tpu.memory_space<vmem>>, vector<1x128xf32>
    tpu.vector_store %arg6[%36, %c0_9], %35 {strides = array<i32>} : memref<8x128xf32, #tpu.memory_space<vmem>>, vector<1x128xf32>,
    %c5_i32 = arith.constant 5 : i32
    %38 = arith.addi %2, %c5_i32 : i32
    %39 = arith.index_cast %38 : i32 to index
    %40 = memref.load %arg2[%39] : memref<16xi32, #tpu.memory_space<smem>>
    %41 = arith.index_cast %40 : i32 to index
    %c0_10 = arith.constant 0 : index
    %42 = vector.load %arg3[%41, %c0_10] : memref<64x128xf32, #tpu.memory_space<vmem>>, vector<1x128xf32>
    %43 = arith.index_cast %c5_i32 : i32 to index
    %c0_11 = arith.constant 0 : index
    %44 = vector.load %arg6[%43, %c0_11] : memref<8x128xf32, #tpu.memory_space<vmem>>, vector<1x128xf32>
    tpu.vector_store %arg6[%43, %c0_11], %42 {strides = array<i32>} : memref<8x128xf32, #tpu.memory_space<vmem>>, vector<1x128xf32>,
    %c6_i32 = arith.constant 6 : i32
    %45 = arith.addi %2, %c6_i32 : i32
    %46 = arith.index_cast %45 : i32 to index
    %47 = memref.load %arg2[%46] : memref<16xi32, #tpu.memory_space<smem>>
    %48 = arith.index_cast %47 : i32 to index
    %c0_12 = arith.constant 0 : index
    %49 = vector.load %arg3[%48, %c0_12] : memref<64x128xf32, #tpu.memory_space<vmem>>, vector<1x128xf32>
    %50 = arith.index_cast %c6_i32 : i32 to index
    %c0_13 = arith.constant 0 : index
    %51 = vector.load %arg6[%50, %c0_13] : memref<8x128xf32, #tpu.memory_space<vmem>>, vector<1x128xf32>
    tpu.vector_store %arg6[%50, %c0_13], %49 {strides = array<i32>} : memref<8x128xf32, #tpu.memory_space<vmem>>, vector<1x128xf32>,
    %c7_i32 = arith.constant 7 : i32
    %52 = arith.addi %2, %c7_i32 : i32
    %53 = arith.index_cast %52 : i32 to index
    %54 = memref.load %arg2[%53] : memref<16xi32, #tpu.memory_space<smem>>
    %55 = arith.index_cast %54 : i32 to index
    %c0_14 = arith.constant 0 : index
    %56 = vector.load %arg3[%55, %c0_14] : memref<64x128xf32, #tpu.memory_space<vmem>>, vector<1x128xf32>
    %57 = arith.index_cast %c7_i32 : i32 to index
    %c0_15 = arith.constant 0 : index
    %58 = vector.load %arg6[%57, %c0_15] : memref<8x128xf32, #tpu.memory_space<vmem>>, vector<1x128xf32>
    tpu.vector_store %arg6[%57, %c0_15], %56 {strides = array<i32>} : memref<8x128xf32, #tpu.memory_space<vmem>>, vector<1x128xf32>,
    %c8_i32_16 = arith.constant 8 : i32
    %c0_17 = arith.constant 0 : index
    %c0_18 = arith.constant 0 : index
    %59 = vector.load %arg6[%c0_17, %c0_18] : memref<8x128xf32, #tpu.memory_space<vmem>>, vector<8x128xf32>
    %cst = arith.constant 11.3137083 : f32
    %60 = vector.broadcast %cst : f32 to vector<8x128xf32>
    %61 = arith.mulf %59, %60 : vector<8x128xf32>
    %c0_19 = arith.constant 0 : index
    %c0_20 = arith.constant 0 : index
    %62 = vector.load %arg4[%c0_19, %c0_20] : memref<8x128xf32, #tpu.memory_space<vmem>>, vector<8x128xf32>
    %63 = arith.addf %61, %62 : vector<8x128xf32>
    %c0_21 = arith.constant 0 : index
    %c0_22 = arith.constant 0 : index
    %c0_23 = arith.constant 0 : index
    %64 = vector.load %arg5[%c0_21, %c0_22, %c0_23] : memref<1x8x128xf32, #tpu.memory_space<vmem>>, vector<1x8x128xf32>
    %65 = vector.shape_cast %64 : vector<1x8x128xf32> to vector<8x128xf32>
    %66 = vector.shape_cast %63 : vector<8x128xf32> to vector<1x8x128xf32>
    tpu.vector_store %arg5[%c0_21, %c0_22, %c0_23], %66 {strides = array<i32>} : memref<1x8x128xf32, #tpu.memory_space<vmem>>, vector<1x8x128xf32>,
    return
  }
  func.func @transform_0(%arg0: i32, %arg1: i32, %arg2: memref<16xi32, #tpu.memory_space<smem>>) -> (i32, i32) {
    %c0_i32 = arith.constant 0 : i32
    %c0_i32_0 = arith.constant 0 : i32
    %c0_i32_1 = arith.constant 0 : i32
    return %c0_i32, %c0_i32_0 : i32, i32
  }
  func.func @transform_1(%arg0: i32, %arg1: i32, %arg2: memref<16xi32, #tpu.memory_space<smem>>) -> (i32, i32) {
    %c0_i32 = arith.constant 0 : i32
    %c0_i32_0 = arith.constant 0 : i32
    return %arg0, %c0_i32 : i32, i32
  }
  func.func @transform_2(%arg0: i32, %arg1: i32, %arg2: memref<16xi32, #tpu.memory_space<smem>>) -> (i32, i32, i32) {
    %c0_i32 = arith.constant 0 : i32
    %c0_i32_0 = arith.constant 0 : i32
    return %arg1, %arg0, %c0_i32 : i32, i32, i32
  }
}

</mosaic_0001>

<llo_original>
// kernel: tpu_custom_call.1
$region0: #{tpu_custom_call.1}
  #allocation0 [shape = 'u32[]', space=smem, size = 0x4, offset = 0x4, fixed_abs, tag = 'smem constant byte address 0x4 - core index']
  #allocation1 [shape = 'u32[144,128]{1,0:T(1,128)}', space=vmem, size = 0x12000, scoped, tag = 'internal scratch']
  #allocation2 [shape = 'f32[8,128]{1,0:T(8,128)}', space=vmem, size = 0x1000, scoped, tag = 'scratch operand']
  #allocation3 [shape = 's32[1]{0}', space=sflag, size = 0x4, scoped, tag = 'scoped memory for tpu_custom_call.1']
  #allocation4 [shape = 'u8[512]{0}', space=smem, size = 0x200, scoped, tag = 'prefetched SMEM operand 0']
  %s0 = inlined_call_operand.hbm [shape: s32[16], index: 0, kind: input, shape index: {}]
  %s1 = inlined_call_operand.hbm [shape: f32[64,128], index: 1, kind: input, shape index: {}]
  %s2 = inlined_call_operand.hbm [shape: f32[8,128], index: 2, kind: input, shape index: {}]
  %s3 = inlined_call_operand.hbm [shape: f32[2,8,128], index: 3, kind: output, shape index: {}]
  %s4 = sld [smem:[#allocation0]]
  $region49: #{tpu_custom_call.1} parent=0
    _
  %s6 = ssub.s32 1, %s4
  %s7 = scalar_select 0, %s6, %s4
  %9 = dma.hbm_to_smem %s0, 16, [#allocation4], [#allocation3]
  %10 = dma.done [#allocation3], 16
  %11 = sfence
  $region1: #{tpu_custom_call.1} parent=0
    #allocation5 [shape = 'u8[32768]{0}', space=vmem, size = 0x8000, scoped, tag = 'input window, operand 1, single buffered']
    #allocation6 [shape = 's32[2]{0}', space=sflag, size = 0x8, scoped, tag = 'scoped memory for tpu_custom_call.1']
    #allocation7 [shape = 's32[2]{0}', space=sflag, size = 0x8, scoped, tag = 'scoped memory for tpu_custom_call.1']
    #allocation8 [shape = 'u8[4096]{0}', space=vmem, size = 0x1000, scoped, tag = 'input window, operand 2, single buffered']
    #allocation9 [shape = 's32[1]{0}', space=sflag, size = 0x4, scoped, tag = 'scoped memory for tpu_custom_call.1']
    #allocation10 [shape = 'u8[8192]{0}', space=vmem, size = 0x2000, scoped, tag = 'output window, operand 0']
    %12 = vsyncpa [#allocation6], 0
    %13 = vsyncpa [#allocation9], 0
    %14 = vsyncpa [#allocation7], 0
    %s15 = scalar_lea.sflag [#allocation7], 1
    %16 = vsyncpa %s15, 0
    loop: start=0, step=1, limit=4
    $region2: #{tpu_custom_call.1} parent=1 // loop_pre_header
      _
    $region3: #{tpu_custom_call.1} parent=1 // loop_header
      %s18 = sphi 0, %s22
      %p19 = scmp.ge.s32.totalorder %s18, 4
      %s25 = sphi 0, %s37
      %s26 = sphi 0, %s33
      %s27 = sphi 0, %s25
      %s28 = sphi 0, %s26
      %s29 = sphi 0, %s27
      %s30 = sphi 0, %s28
      %s38 = sphi 0, %s38
      %s40 = sphi 0, %s38
      %s41 = sphi 0, %s40
      %s55 = sphi 0, %s41
      %s61 = sphi 0, %s63
      %s64 = sphi 0, %s61
      %s65 = sphi 0, %s64
      %s81 = sphi 0, %s65
      %s89 = sphi 0, %s91
      %s92 = sphi 0, %s89
      %s93 = sphi 0, %s92
      %s109 = sphi 0, %s93
    $region4: #{tpu_custom_call.1} parent=1 // loop_header_branch
      %21 = sbr.rel (%p19) target = $region8
    $region5: #{tpu_custom_call.1} parent=1 // loop_body
      %s23 = ssub.s32 %s18, 1
      %s24 = ssub.s32 %s18, 2
      %s31 = sadd.s32 1, %s26
      %p32 = scmp.ge.s32.totalorder %s31, 2
      %s33 = scalar_select %p32, 0, %s31
      %s34 = sadd.s32 1, %s25
      %s35 = scalar_select %p32, %s34, %s25
      %p36 = scmp.ge.s32.totalorder %s35, 1
      %s37 = scalar_select %p36, 0, %s35
      %s39 = sadd.s32 %s38, 1
      %p42 = scmp.eq.s32.totalorder %s18, 1
      %p43 = scmp.ne.s32.totalorder %s38, %s40
      %p44 = scmp.eq.s32.totalorder %s18, 0
      %p45 = por %p43, %p44
      %p46 = scmp.ne.s32.totalorder %s38, %s40
      %p47 = scmp.eq.s32.totalorder %s23, 1
      %p48 = por %p46, %p47
      %p49 = scmp.ne.s32.totalorder %s40, %s41
      %p50 = scmp.eq.s32.totalorder %s23, 0
      %p51 = por %p49, %p50
      %p52 = scmp.ne.s32.totalorder %s40, %s41
      %p53 = scmp.eq.s32.totalorder %s24, 1
      %p54 = por %p52, %p53
      %p56 = scmp.ne.s32.totalorder %s41, %s55
      %p57 = scmp.eq.s32.totalorder %s24, 0
      %p58 = por %p56, %p57
      %s59 = ssub.s32 %s25, %s37
      %p60 = scmp.eq.s32.totalorder %s59, 0
      %s62 = sadd.s32 %s61, 1
      %s63 = scalar_select %p60, %s61, %s62
      %p66 = pneg %p60
      %p67 = scmp.eq.s32.totalorder %s18, 1
      %p68 = por %p66, %p67
      %p69 = scmp.ne.s32.totalorder %s61, %s64
      %p70 = scmp.eq.s32.totalorder %s18, 0
      %p71 = por %p69, %p70
      %p72 = scmp.ne.s32.totalorder %s61, %s64
      %p73 = scmp.eq.s32.totalorder %s23, 1
      %p74 = por %p72, %p73
      %p75 = scmp.ne.s32.totalorder %s64, %s65
      %p76 = scmp.eq.s32.totalorder %s23, 0
      %p77 = por %p75, %p76
      %p78 = scmp.ne.s32.totalorder %s64, %s65
      %p79 = scmp.eq.s32.totalorder %s24, 1
      %p80 = por %p78, %p79
      %p82 = scmp.ne.s32.totalorder %s65, %s81
      %p83 = scmp.eq.s32.totalorder %s24, 0
      %p84 = por %p82, %p83
      %s85 = ssub.s32 %s26, %s33
      %s86 = ssub.s32 %s25, %s37
      %s87 = sor.u32 %s85, %s86
      %p88 = scmp.eq.s32.totalorder %s87, 0
      %s90 = sadd.s32 %s89, 1
      %s91 = scalar_select %p88, %s89, %s90
      %p94 = pneg %p88
      %p95 = scmp.eq.s32.totalorder %s18, 1
      %p96 = por %p94, %p95
      %p97 = scmp.ne.s32.totalorder %s89, %s92
      %p98 = scmp.eq.s32.totalorder %s18, 0
      %p99 = por %p97, %p98
      %p100 = scmp.ne.s32.totalorder %s89, %s92
      %p101 = scmp.eq.s32.totalorder %s23, 1
      %p102 = por %p100, %p101
      %p103 = scmp.ne.s32.totalorder %s92, %s93
      %p104 = scmp.eq.s32.totalorder %s23, 0
      %p105 = por %p103, %p104
      %p106 = scmp.ne.s32.totalorder %s92, %s93
      %p107 = scmp.eq.s32.totalorder %s24, 1
      %p108 = por %p106, %p107
      %p110 = scmp.ne.s32.totalorder %s93, %s109
      %p111 = scmp.eq.s32.totalorder %s24, 0
      %p112 = por %p110, %p111
      %p113 = scmp.le.s32.totalorder 1, %s18
      %p114 = scmp.lt.s32.totalorder %s18, 3
      %p115 = pnand %p113, %p114
      %p116 = pneg %p115
      // Predicated region
      $region9: #{tpu_custom_call.1} parent=5 // pred_check
        _
      $region10: #{tpu_custom_call.1} parent=5 // pred_check_branch
        %118 = sbr.rel (%p115) target = $region12
      $region11: #{tpu_custom_call.1} parent=5 // pred_region
        %s119 = ssub.s32 %s18, 1
        // Predicated region
        $region13: #{tpu_custom_call.1} parent=11 // pred_check
          %p120 = pneg %p51
        $region14: #{tpu_custom_call.1} parent=11 // pred_check_branch
          %122 = sbr.rel (%p120) target = $region16
        $region15: #{tpu_custom_call.1} parent=11 // pred_region
          %s124 = ssub.s32 1024, 1024
          %125 = vsyncadd [#allocation6], %s124
          %s126 = sshll.u32 [#allocation5], 4
          %s127 = int_to_ptr.vmem [resolvable:$true] %s126
          %132 = dma.hbm_to_vmem [thread:$0]  %s1, 1024, %s127, [#allocation6], 128, 128, 8
        $region16: #{tpu_custom_call.1} parent=11 // pred_fallthru
          _
        // Predicated region
        $region17: #{tpu_custom_call.1} parent=11 // pred_check
          %p133 = pneg %p77
        $region18: #{tpu_custom_call.1} parent=11 // pred_check_branch
          %135 = sbr.rel (%p133) target = $region20
        $region19: #{tpu_custom_call.1} parent=11 // pred_region
          %s137 = ssub.s32 128, 128
          %138 = vsyncadd [#allocation9], %s137
          %s139 = smul.addr %s27, 128
          %s140 = scalar_lea.hbm %s2, %s139
          %s142 = sshll.u32 [#allocation8], 4
          %s143 = int_to_ptr.vmem [resolvable:$true] %s142
          %145 = dma.hbm_to_vmem [thread:$0]  %s140, 128, %s143, [#allocation9]
        $region20: #{tpu_custom_call.1} parent=11 // pred_fallthru
          _
      $region12: #{tpu_custom_call.1} parent=5 // pred_fallthru
        _
      %p146 = scmp.lt.s32.totalorder %s18, 2
      // Predicated region
      $region21: #{tpu_custom_call.1} parent=5 // pred_check
        %p147 = pneg %p146
      $region22: #{tpu_custom_call.1} parent=5 // pred_check_branch
        %149 = sbr.rel (%p147) target = $region24
      $region23: #{tpu_custom_call.1} parent=5 // pred_region
        _
      $region24: #{tpu_custom_call.1} parent=5 // pred_fallthru
        _
      %p150 = scmp.le.s32.totalorder 1, %s18
      %p151 = scmp.lt.s32.totalorder %s18, 3
      %p152 = pnand %p150, %p151
      %p153 = pneg %p152
      // Predicated region
      $region25: #{tpu_custom_call.1} parent=5 // pred_check
        _
      $region26: #{tpu_custom_call.1} parent=5 // pred_check_branch
        %155 = sbr.rel (%p152) target = $region28
      $region27: #{tpu_custom_call.1} parent=5 // pred_region
        %s156 = ssub.s32 %s18, 1
        // Predicated region
        $region29: #{tpu_custom_call.1} parent=27 // pred_check
          %p157 = pneg %p51
        $region30: #{tpu_custom_call.1} parent=27 // pred_check_branch
          %159 = sbr.rel (%p157) target = $region32
        $region31: #{tpu_custom_call.1} parent=27 // pred_region
          %160 = dma.done [#allocation6], 1024
        $region32: #{tpu_custom_call.1} parent=27 // pred_fallthru
          _
        // Predicated region
        $region33: #{tpu_custom_call.1} parent=27 // pred_check
          %p161 = pneg %p77
        $region34: #{tpu_custom_call.1} parent=27 // pred_check_branch
          %163 = sbr.rel (%p161) target = $region36
        $region35: #{tpu_custom_call.1} parent=27 // pred_region
          %164 = dma.done [#allocation9], 128
        $region36: #{tpu_custom_call.1} parent=27 // pred_fallthru
          _
        %p165 = pneg %p51
        %p166 = pneg %p48
        %p167 = pneg %p77
        %p168 = pneg %p74
        %p169 = pneg %p105
        %p170 = pneg %p102
        %s171 = sand.u32 %s92, 1
        %s172 = scalar_lea.sflag [#allocation7], %s171
        %s173 = sand.u32 %s92, 1
        %s174 = smul.addr %s173, 8
        %s175 = scalar_lea.vmem [#allocation10], %s174
        %s176 = smul.u32 %s28, 8
        %s177 = smul.u32 %s27, 8
        %s178 = sadd.s32 %s176, %s177
        %s179 = sld [smem:[#allocation4 + %s178]]
        %s180 = scalar_lea.vmem [#allocation5], %s179
        %v181 = vld [vmem:[%s180] sm:$0x1]
        %182 = vst [vmem:[#allocation2] sm:$0x1] %v181
        %s183 = sadd.s32 %s178, 1
        %s184 = sld [smem:[#allocation4 + %s183]]
        %s185 = scalar_lea.vmem [#allocation5], %s184
        %v186 = vld [vmem:[%s185] sm:$0x1]
        %187 = vst [vmem:[#allocation2 + $0x1] sm:$0x1] %v186
        %s188 = sadd.s32 %s178, 2
        %s189 = sld [smem:[#allocation4 + %s188]]
        %s190 = scalar_lea.vmem [#allocation5], %s189
        %v191 = vld [vmem:[%s190] sm:$0x1]
        %192 = vst [vmem:[#allocation2 + $0x2] sm:$0x1] %v191
        %s193 = sadd.s32 %s178, 3
        %s194 = sld [smem:[#allocation4 + %s193]]
        %s195 = scalar_lea.vmem [#allocation5], %s194
        %v196 = vld [vmem:[%s195] sm:$0x1]
        %197 = vst [vmem:[#allocation2 + $0x3] sm:$0x1] %v196
        %s198 = sadd.s32 %s178, 4
        %s199 = sld [smem:[#allocation4 + %s198]]
        %s200 = scalar_lea.vmem [#allocation5], %s199
        %v201 = vld [vmem:[%s200] sm:$0x1]
        %202 = vst [vmem:[#allocation2 + $0x4] sm:$0x1] %v201
        %s203 = sadd.s32 %s178, 5
        %s204 = sld [smem:[#allocation4 + %s203]]
        %s205 = scalar_lea.vmem [#allocation5], %s204
        %v206 = vld [vmem:[%s205] sm:$0x1]
        %207 = vst [vmem:[#allocation2 + $0x5] sm:$0x1] %v206
        %s208 = sadd.s32 %s178, 6
        %s209 = sld [smem:[#allocation4 + %s208]]
        %s210 = scalar_lea.vmem [#allocation5], %s209
        %v211 = vld [vmem:[%s210] sm:$0x1]
        %212 = vst [vmem:[#allocation2 + $0x6] sm:$0x1] %v211
        %s213 = sadd.s32 %s178, 7
        %s214 = sld [smem:[#allocation4 + %s213]]
        %s215 = scalar_lea.vmem [#allocation5], %s214
        %v216 = vld [vmem:[%s215] sm:$0x1]
        %217 = vst [vmem:[#allocation2 + $0x7] sm:$0x1] %v216
        %v218 = vld [vmem:[#allocation2] sm:$0xff]
        %v219 = vmul.f32 %v218, 11.313708
        %v220 = vld [vmem:[#allocation8] sm:$0xff]
        %v221 = vadd.f32 %v219, %v220
        %222 = vst [vmem:[%s175] sm:$0xff] %v221
        %s223 = sand.u32 %s92, 1
        %s224 = scalar_lea.sflag [#allocation7], %s223
        %s225 = sand.u32 %s92, 1
        %s226 = smul.addr %s225, 8
        %s227 = scalar_lea.vmem [#allocation10], %s226
        // Predicated region
        $region37: #{tpu_custom_call.1} parent=27 // pred_check
          %p228 = pneg %p102
        $region38: #{tpu_custom_call.1} parent=27 // pred_check_branch
          %230 = sbr.rel (%p228) target = $region40
        $region39: #{tpu_custom_call.1} parent=27 // pred_region
          %s232 = ssub.s32 128, 128
          %233 = vsyncadd %s224, %s232
          %s234 = sadd.s32 %s27, %s28
          %s235 = smul.addr %s234, 128
          %s236 = scalar_lea.hbm %s3, %s235
          %s238 = sshll.u32 %s227, 4
          %s239 = int_to_ptr.vmem [resolvable:$true] %s238
          %241 = dma.vmem_to_hbm [thread:$0]  %s239, 128, %s236, %s224
        $region40: #{tpu_custom_call.1} parent=27 // pred_fallthru
          _
      $region28: #{tpu_custom_call.1} parent=5 // pred_fallthru
        _
      %p242 = scmp.le.s32.totalorder 2, %s18
      // Predicated region
      $region41: #{tpu_custom_call.1} parent=5 // pred_check
        %p243 = pneg %p242
      $region42: #{tpu_custom_call.1} parent=5 // pred_check_branch
        %245 = sbr.rel (%p243) target = $region44
      $region43: #{tpu_custom_call.1} parent=5 // pred_region
        %s246 = ssub.s32 %s18, 2
        // Predicated region
        $region45: #{tpu_custom_call.1} parent=43 // pred_check
          %p247 = pneg %p108
        $region46: #{tpu_custom_call.1} parent=43 // pred_check_branch
          %249 = sbr.rel (%p247) target = $region48
        $region47: #{tpu_custom_call.1} parent=43 // pred_region
          %s250 = sand.u32 %s93, 1
          %s251 = scalar_lea.sflag [#allocation7], %s250
          %s252 = sand.u32 %s93, 1
          %s253 = smul.addr %s252, 8
          %s254 = scalar_lea.vmem [#allocation10], %s253
          %255 = dma.done %s251, 128
        $region48: #{tpu_custom_call.1} parent=43 // pred_fallthru
          _
      $region44: #{tpu_custom_call.1} parent=5 // pred_fallthru
        _
    $region6: #{tpu_custom_call.1} parent=1 // loop_footer
      %s22 = sadd.s32 1, %s18
    $region7: #{tpu_custom_call.1} parent=1 // loop_footer_branch
      %17 = sbr.rel target = $region3
    $region8: #{tpu_custom_call.1} parent=1 // loop_exit
      _
    %256 = vsyncpa [#allocation6], 1
    %s257 = scalar_lea.sflag [#allocation6], 1
    %258 = vsyncpa %s257, 1
    %259 = vsyncpa [#allocation9], 1
    %260 = vsyncpa [#allocation7], 1
    %s261 = scalar_lea.sflag [#allocation7], 1
    %262 = vsyncpa %s261, 1

</llo_original>
